<compile_context>
chip_gen: v7x
topology: tpu7x:2x2x1
jax: 0.10.0
libtpu: 0.0.40
codegen_flags: <defaults>
</compile_context>

<pallas_src>
import jax
import jax.numpy as jnp
from jax.experimental import pallas as pl
from jax.experimental.pallas import tpu as pltpu


# ----------------------------- Pallas kernel ------------------------------

def dcn_kernel(x_ref, cw_ref, cb_ref, w1_ref, b1_ref, w2_ref, b2_ref,
               wcx_ref, wcd_ref, o_ref):
    x0 = x_ref[...]                     # (D, tm) f32, feature-major batch tile
    n_cross = cw_ref.shape[1]

    # ---- cross network: x_{l+1} = x0 * (x_l . w_l) + b_l + x_l ----
    # VPU multiply + sublane (axis-0) reduce; no N=1 MXU matmuls.
    x = x0
    for l in range(n_cross):                            # static unroll (3)
        w_l = cw_ref[:, l:l + 1]                        # (D, 1)
        b_l = cb_ref[:, l:l + 1]                        # (D, 1)
        xw = jnp.sum(x * w_l, axis=0, keepdims=True)    # (1, tm)
        x = x0 * xw + b_l + x

    # ---- DNN branch (MXU, wide N = batch tile) ----
    # TODO(synk): dropout / batchnorm omitted (eval-mode identity, use_bn=False).
    h = jnp.dot(w1_ref[...], x0, preferred_element_type=jnp.float32)   # (H1, tm)
    h = jnp.maximum(h + b1_ref[...], 0.0)
    h = jnp.dot(w2_ref[...], h, preferred_element_type=jnp.float32)    # (H2, tm)
    h = jnp.maximum(h + b2_ref[...], 0.0)

    # ---- combination Linear(bias=False) over cat(cross, dnn): lane-dense ----
    logit = (jnp.sum(x * wcx_ref[...], axis=0, keepdims=True)
             + jnp.sum(h * wcd_ref[...], axis=0, keepdims=True))        # (1, tm)
    o_ref[...] = logit.astype(o_ref.dtype)


# ------------------------------ wrappers -----------------------------------

def dcn_mlp(x_dnn_t, params, *, tm=512):
    """x_dnn_t: (D, B) f32 feature-major activations.  Returns (B, 1) logits."""
    D, B = x_dnn_t.shape
    cw, cb = params["cross_w"], params["cross_b"]           # (D, n_cross)
    w1, b1 = params["w1"], params["b1"]                     # (H1, D), (H1, 1)
    w2, b2 = params["w2"], params["b2"]                     # (H2, H1), (H2, 1)
    wcx, wcd = params["wc_cross"], params["wc_dnn"]         # (D, 1), (H2, 1)
    H1, H2 = w1.shape[0], w2.shape[0]
    n_cross = cw.shape[1]

    # batch tile: >=128 (lane-dense output), clamp to padded batch; pad batch.
    tm = max(128, min(tm, 128 * pl.cdiv(B, 128)))
    Bp = tm * pl.cdiv(B, tm)
    if Bp != B:
        x_dnn_t = jnp.pad(x_dnn_t, ((0, 0), (0, Bp - B)))
    grid = (Bp // tm,)
    full = lambda i: (0, 0)   # weights / biases: same full block every step

    out = pl.pallas_call(
        dcn_kernel,
        out_shape=jax.ShapeDtypeStruct((1, Bp), jnp.float32),
        grid_spec=pltpu.PrefetchScalarGridSpec(
            num_scalar_prefetch=0,
            grid=grid,
            in_specs=[
                pl.BlockSpec((D, tm), lambda i: (0, i)),    # activations (feature-major)
                pl.BlockSpec((D, n_cross), full),           # cross weights
                pl.BlockSpec((D, n_cross), full),           # cross biases
                pl.BlockSpec((H1, D), full),                # W1 (PyTorch (out,in) layout)
                pl.BlockSpec((H1, 1), full),                # b1
                pl.BlockSpec((H2, H1), full),               # W2
                pl.BlockSpec((H2, 1), full),                # b2
                pl.BlockSpec((D, 1), full),                 # combination weight, cross slice
                pl.BlockSpec((H2, 1), full),                # combination weight, dnn slice
            ],
            out_specs=pl.BlockSpec((1, tm), lambda i: (0, i)),   # lane-dense logits
        ),
        compiler_params=pltpu.CompilerParams(
            dimension_semantics=("parallel",),
            allow_input_fusion=[True] + [False] * 8,
        ),
    )(x_dnn_t, cw, cb, w1, b1, w2, b2, wcx, wcd)

    return out[0, :B][:, None]                              # (B, 1)


def deep_cross_net_forward(x_ids, params, *, tm=512):
    """x_ids: (B, field) int32 feature ids -> (B, 1) f32 logits."""
    emb = params["embedding"]                               # (feature_num, dim)
    B = x_ids.shape[0]
    x_emb = jnp.take(emb, x_ids, axis=0)                    # (B, field, dim)
    x_dnn_t = x_emb.reshape(B, -1).T                        # (D, B) feature-major
    return dcn_mlp(x_dnn_t, params, tm=tm)


def init_params(key, feature_num, field_num, latent_dim, mlp_dims, cross_num=3):
    D = field_num * latent_dim
    h1, h2 = mlp_dims
    ks = jax.random.split(key, 9)
    s = 0.1
    n = lambda k, shp: s * jax.random.normal(k, shp, jnp.float32)
    return {
        "embedding": n(ks[0], (feature_num, latent_dim)),
        # cross net: column l is w_l / b_l  (PyTorch Linear(D,1).weight transposed)
        "cross_w": n(ks[1], (D, cross_num)),
        "cross_b": n(ks[2], (D, cross_num)),
        # DNN weights kept in PyTorch (out, in) layout; biases as columns.
        "w1": n(ks[3], (h1, D)),
        "b1": n(ks[4], (h1, 1)),
        "w2": n(ks[5], (h2, h1)),
        "b2": n(ks[6], (h2, 1)),
        # combination Linear(h2 + D, 1, bias=False), split & transposed:
        # weight[:, :D].T and weight[:, D:].T
        "wc_cross": n(ks[7], (D, 1)),
        "wc_dnn": n(ks[8], (h2, 1)),
    }


# --------------------------------- main -----------------------------------

if __name__ == "__main__":
    # args: feature=100, field=4, dim=8, mlp_dims=(64, 32), cross_num=3,
    # dropout inactive, bn off.
    feature_num, field_num, latent_dim = 100, 4, 8
    mlp_dims = (64, 32)
    cross_num = 3
    batch = 200          # deliberately NOT a multiple of 128: exercises padding

    key = jax.random.PRNGKey(0)
    kp, kx = jax.random.split(key)
    params = init_params(kp, feature_num, field_num, latent_dim, mlp_dims, cross_num)
    x_ids = jax.random.randint(kx, (batch, field_num), 0, feature_num, jnp.int32)

    # tm=128 here -> 2 grid steps on the tiny test batch (keeps both v7x TCs busy);
    # default tm=512 for realistic serving batches.
    logit = deep_cross_net_forward(x_ids, params, tm=128)
    jax.block_until_ready(logit)

    # ---- pure-JAX reference (row-major, PyTorch-equivalent math) ----
    x0 = jnp.take(params["embedding"], x_ids, axis=0).reshape(batch, -1)
    x = x0
    for l in range(cross_num):
        xw = x @ params["cross_w"][:, l:l + 1]                      # (B, 1)
        x = x0 * xw + params["cross_b"][:, l][None, :] + x
    h = jnp.maximum(x0 @ params["w1"].T + params["b1"].T, 0.0)
    h = jnp.maximum(h @ params["w2"].T + params["b2"].T, 0.0)
    ref = x @ params["wc_cross"] + h @ params["wc_dnn"]             # (B, 1)

    assert logit.shape == (batch, 1)
    assert jnp.allclose(logit, ref, atol=1e-3, rtol=1e-3), \
        float(jnp.max(jnp.abs(logit - ref)))

    print("KERNEL_OK")
</pallas_src>

<mosaic_0001>
module attributes {stable_mosaic.version = 11 : i64} {
  func.func @dcn_kernel(%arg0: i32, %arg1: memref<32x128xf32, #tpu.memory_space<vmem>>, %arg2: memref<32x3xf32, #tpu.memory_space<vmem>>, %arg3: memref<32x3xf32, #tpu.memory_space<vmem>>, %arg4: memref<64x32xf32, #tpu.memory_space<vmem>>, %arg5: memref<64x1xf32, #tpu.memory_space<vmem>>, %arg6: memref<32x64xf32, #tpu.memory_space<vmem>>, %arg7: memref<32x1xf32, #tpu.memory_space<vmem>>, %arg8: memref<32x1xf32, #tpu.memory_space<vmem>>, %arg9: memref<32x1xf32, #tpu.memory_space<vmem>>, %arg10: memref<1x128xf32, #tpu.memory_space<vmem>>) attributes {dimension_semantics = [#tpu.dimension_semantics<parallel>], iteration_bounds = array<i64: 2>, scalar_prefetch = 0 : i64, scratch_operands = 0 : i64, tpu.core_type = #tpu.core_type<tc>, window_params = [{transform_indices = @transform_0, window_bounds = array<i64: 32, 128>}, {pipeline_mode = #tpu.pipeline_mode<synchronous>, transform_indices = @transform_1, window_bounds = array<i64: 32, 3>}, {pipeline_mode = #tpu.pipeline_mode<synchronous>, transform_indices = @transform_2, window_bounds = array<i64: 32, 3>}, {pipeline_mode = #tpu.pipeline_mode<synchronous>, transform_indices = @transform_3, window_bounds = array<i64: 64, 32>}, {pipeline_mode = #tpu.pipeline_mode<synchronous>, transform_indices = @transform_4, window_bounds = array<i64: 64, 1>}, {pipeline_mode = #tpu.pipeline_mode<synchronous>, transform_indices = @transform_5, window_bounds = array<i64: 32, 64>}, {pipeline_mode = #tpu.pipeline_mode<synchronous>, transform_indices = @transform_6, window_bounds = array<i64: 32, 1>}, {pipeline_mode = #tpu.pipeline_mode<synchronous>, transform_indices = @transform_7, window_bounds = array<i64: 32, 1>}, {pipeline_mode = #tpu.pipeline_mode<synchronous>, transform_indices = @transform_8, window_bounds = array<i64: 32, 1>}, {transform_indices = @transform_9, window_bounds = array<i64: 1, 128>}]} {
    %c0 = arith.constant 0 : index
    %c0_0 = arith.constant 0 : index
    %0 = vector.load %arg1[%c0, %c0_0] : memref<32x128xf32, #tpu.memory_space<vmem>>, vector<32x128xf32>
    %c0_1 = arith.constant 0 : index
    %c0_2 = arith.constant 0 : index
    %1 = vector.load %arg2[%c0_1, %c0_2] : memref<32x3xf32, #tpu.memory_space<vmem>>, vector<32x1xf32>
    %c0_3 = arith.constant 0 : index
    %c0_4 = arith.constant 0 : index
    %2 = vector.load %arg3[%c0_3, %c0_4] : memref<32x3xf32, #tpu.memory_space<vmem>>, vector<32x1xf32>
    %3 = vector.broadcast %1 : vector<32x1xf32> to vector<32x128xf32>
    %4 = arith.mulf %0, %3 : vector<32x128xf32>
    %cst = arith.constant dense<0.000000e+00> : vector<128xf32>
    %5 = vector.multi_reduction <add>, %4, %cst [0] : vector<32x128xf32> to vector<128xf32>
    %6 = vector.shape_cast %5 : vector<128xf32> to vector<1x128xf32>
    %7 = vector.broadcast %6 : vector<1x128xf32> to vector<32x128xf32>
    %8 = arith.mulf %0, %7 : vector<32x128xf32>
    %9 = vector.broadcast %2 : vector<32x1xf32> to vector<32x128xf32>
    %10 = arith.addf %8, %9 : vector<32x128xf32>
    %11 = arith.addf %10, %0 : vector<32x128xf32>
    %c0_5 = arith.constant 0 : index
    %c1 = arith.constant 1 : index
    %12 = vector.load %arg2[%c0_5, %c1] : memref<32x3xf32, #tpu.memory_space<vmem>>, vector<32x1xf32>
    %c0_6 = arith.constant 0 : index
    %c1_7 = arith.constant 1 : index
    %13 = vector.load %arg3[%c0_6, %c1_7] : memref<32x3xf32, #tpu.memory_space<vmem>>, vector<32x1xf32>
    %14 = vector.broadcast %12 : vector<32x1xf32> to vector<32x128xf32>
    %15 = arith.mulf %11, %14 : vector<32x128xf32>
    %cst_8 = arith.constant dense<0.000000e+00> : vector<128xf32>
    %16 = vector.multi_reduction <add>, %15, %cst_8 [0] : vector<32x128xf32> to vector<128xf32>
    %17 = vector.shape_cast %16 : vector<128xf32> to vector<1x128xf32>
    %18 = vector.broadcast %17 : vector<1x128xf32> to vector<32x128xf32>
    %19 = arith.mulf %0, %18 : vector<32x128xf32>
    %20 = vector.broadcast %13 : vector<32x1xf32> to vector<32x128xf32>
    %21 = arith.addf %19, %20 : vector<32x128xf32>
    %22 = arith.addf %21, %11 : vector<32x128xf32>
    %c0_9 = arith.constant 0 : index
    %c2 = arith.constant 2 : index
    %23 = vector.load %arg2[%c0_9, %c2] : memref<32x3xf32, #tpu.memory_space<vmem>>, vector<32x1xf32>
    %c0_10 = arith.constant 0 : index
    %c2_11 = arith.constant 2 : index
    %24 = vector.load %arg3[%c0_10, %c2_11] : memref<32x3xf32, #tpu.memory_space<vmem>>, vector<32x1xf32>
    %25 = vector.broadcast %23 : vector<32x1xf32> to vector<32x128xf32>
    %26 = arith.mulf %22, %25 : vector<32x128xf32>
    %cst_12 = arith.constant dense<0.000000e+00> : vector<128xf32>
    %27 = vector.multi_reduction <add>, %26, %cst_12 [0] : vector<32x128xf32> to vector<128xf32>
    %28 = vector.shape_cast %27 : vector<128xf32> to vector<1x128xf32>
    %29 = vector.broadcast %28 : vector<1x128xf32> to vector<32x128xf32>
    %30 = arith.mulf %0, %29 : vector<32x128xf32>
    %31 = vector.broadcast %24 : vector<32x1xf32> to vector<32x128xf32>
    %32 = arith.addf %30, %31 : vector<32x128xf32>
    %33 = arith.addf %32, %22 : vector<32x128xf32>
    %c0_13 = arith.constant 0 : index
    %c0_14 = arith.constant 0 : index
    %34 = vector.load %arg4[%c0_13, %c0_14] : memref<64x32xf32, #tpu.memory_space<vmem>>, vector<64x32xf32>
    %cst_15 = arith.constant dense<0.000000e+00> : vector<64x128xf32>
    %35 = tpu.matmul %34, %0, %cst_15 {dimension_numbers = #tpu.dot_dimension_numbers<[1], [0], [0], [1], [0, 0, 1, 1], [], []>} : vector<64x32xf32>, vector<32x128xf32>, vector<64x128xf32> -> vector<64x128xf32>
    %c0_16 = arith.constant 0 : index
    %c0_17 = arith.constant 0 : index
    %36 = vector.load %arg5[%c0_16, %c0_17] : memref<64x1xf32, #tpu.memory_space<vmem>>, vector<64x1xf32>
    %37 = vector.broadcast %36 : vector<64x1xf32> to vector<64x128xf32>
    %38 = arith.addf %35, %37 : vector<64x128xf32>
    %cst_18 = arith.constant 0.000000e+00 : f32
    %39 = vector.broadcast %cst_18 : f32 to vector<64x128xf32>
    %40 = arith.maximumf %38, %39 : vector<64x128xf32>
    %c0_19 = arith.constant 0 : index
    %c0_20 = arith.constant 0 : index
    %41 = vector.load %arg6[%c0_19, %c0_20] : memref<32x64xf32, #tpu.memory_space<vmem>>, vector<32x64xf32>
    %cst_21 = arith.constant dense<0.000000e+00> : vector<32x128xf32>
    %42 = tpu.matmul %41, %40, %cst_21 {dimension_numbers = #tpu.dot_dimension_numbers<[1], [0], [0], [1], [0, 0, 1, 1], [], []>} : vector<32x64xf32>, vector<64x128xf32>, vector<32x128xf32> -> vector<32x128xf32>
    %c0_22 = arith.constant 0 : index
    %c0_23 = arith.constant 0 : index
    %43 = vector.load %arg7[%c0_22, %c0_23] : memref<32x1xf32, #tpu.memory_space<vmem>>, vector<32x1xf32>
    %44 = vector.broadcast %43 : vector<32x1xf32> to vector<32x128xf32>
    %45 = arith.addf %42, %44 : vector<32x128xf32>
    %cst_24 = arith.constant 0.000000e+00 : f32
    %46 = vector.broadcast %cst_24 : f32 to vector<32x128xf32>
    %47 = arith.maximumf %45, %46 : vector<32x128xf32>
    %c0_25 = arith.constant 0 : index
    %c0_26 = arith.constant 0 : index
    %48 = vector.load %arg8[%c0_25, %c0_26] : memref<32x1xf32, #tpu.memory_space<vmem>>, vector<32x1xf32>
    %49 = vector.broadcast %48 : vector<32x1xf32> to vector<32x128xf32>
    %50 = arith.mulf %33, %49 : vector<32x128xf32>
    %cst_27 = arith.constant dense<0.000000e+00> : vector<128xf32>
    %51 = vector.multi_reduction <add>, %50, %cst_27 [0] : vector<32x128xf32> to vector<128xf32>
    %52 = vector.shape_cast %51 : vector<128xf32> to vector<1x128xf32>
    %c0_28 = arith.constant 0 : index
    %c0_29 = arith.constant 0 : index
    %53 = vector.load %arg9[%c0_28, %c0_29] : memref<32x1xf32, #tpu.memory_space<vmem>>, vector<32x1xf32>
    %54 = vector.broadcast %53 : vector<32x1xf32> to vector<32x128xf32>
    %55 = arith.mulf %47, %54 : vector<32x128xf32>
    %cst_30 = arith.constant dense<0.000000e+00> : vector<128xf32>
    %56 = vector.multi_reduction <add>, %55, %cst_30 [0] : vector<32x128xf32> to vector<128xf32>
    %57 = vector.shape_cast %56 : vector<128xf32> to vector<1x128xf32>
    %58 = arith.addf %52, %57 : vector<1x128xf32>
    %c0_31 = arith.constant 0 : index
    %c0_32 = arith.constant 0 : index
    %59 = vector.load %arg10[%c0_31, %c0_32] : memref<1x128xf32, #tpu.memory_space<vmem>>, vector<1x128xf32>
    tpu.vector_store %arg10[%c0_31, %c0_32], %58 {strides = array<i32>} : memref<1x128xf32, #tpu.memory_space<vmem>>, vector<1x128xf32>,
    return
  }
  func.func @transform_0(%arg0: i32) -> (i32, i32) {
    %c0_i32 = arith.constant 0 : i32
    %c0_i32_0 = arith.constant 0 : i32
    return %c0_i32, %arg0 : i32, i32
  }
  func.func @transform_1(%arg0: i32) -> (i32, i32) {
    %c0_i32 = arith.constant 0 : i32
    %c0_i32_0 = arith.constant 0 : i32
    %c0_i32_1 = arith.constant 0 : i32
    return %c0_i32, %c0_i32_0 : i32, i32
  }
  func.func @transform_2(%arg0: i32) -> (i32, i32) {
    %c0_i32 = arith.constant 0 : i32
    %c0_i32_0 = arith.constant 0 : i32
    %c0_i32_1 = arith.constant 0 : i32
    return %c0_i32, %c0_i32_0 : i32, i32
  }
  func.func @transform_3(%arg0: i32) -> (i32, i32) {
    %c0_i32 = arith.constant 0 : i32
    %c0_i32_0 = arith.constant 0 : i32
    %c0_i32_1 = arith.constant 0 : i32
    return %c0_i32, %c0_i32_0 : i32, i32
  }
  func.func @transform_4(%arg0: i32) -> (i32, i32) {
    %c0_i32 = arith.constant 0 : i32
    %c0_i32_0 = arith.constant 0 : i32
    %c0_i32_1 = arith.constant 0 : i32
    return %c0_i32, %c0_i32_0 : i32, i32
  }
  func.func @transform_5(%arg0: i32) -> (i32, i32) {
    %c0_i32 = arith.constant 0 : i32
    %c0_i32_0 = arith.constant 0 : i32
    %c0_i32_1 = arith.constant 0 : i32
    return %c0_i32, %c0_i32_0 : i32, i32
  }
  func.func @transform_6(%arg0: i32) -> (i32, i32) {
    %c0_i32 = arith.constant 0 : i32
    %c0_i32_0 = arith.constant 0 : i32
    %c0_i32_1 = arith.constant 0 : i32
    return %c0_i32, %c0_i32_0 : i32, i32
  }
  func.func @transform_7(%arg0: i32) -> (i32, i32) {
    %c0_i32 = arith.constant 0 : i32
    %c0_i32_0 = arith.constant 0 : i32
    %c0_i32_1 = arith.constant 0 : i32
    return %c0_i32, %c0_i32_0 : i32, i32
  }
  func.func @transform_8(%arg0: i32) -> (i32, i32) {
    %c0_i32 = arith.constant 0 : i32
    %c0_i32_0 = arith.constant 0 : i32
    %c0_i32_1 = arith.constant 0 : i32
    return %c0_i32, %c0_i32_0 : i32, i32
  }
  func.func @transform_9(%arg0: i32) -> (i32, i32) {
    %c0_i32 = arith.constant 0 : i32
    %c0_i32_0 = arith.constant 0 : i32
    return %c0_i32, %arg0 : i32, i32
  }
}

</mosaic_0001>

<llo_original>
// kernel: tpu_custom_call.1
$region0: #{tpu_custom_call.1}
  #allocation0 [shape = 'u32[]', space=smem, size = 0x4, offset = 0x4, fixed_abs, tag = 'smem constant byte address 0x4 - core index']
  #allocation1 [shape = 'u32[144,128]{1,0:T(1,128)}', space=vmem, size = 0x12000, scoped, tag = 'internal scratch']
  %s0 = inlined_call_operand.vmem [shape: f32[32,256], index: 0, kind: input, shape index: {}]
  %s1 = inlined_call_operand.vmem [shape: f32[32,3], index: 1, kind: input, shape index: {}]
  %s2 = inlined_call_operand.vmem [shape: f32[32,3], index: 2, kind: input, shape index: {}]
  %s3 = inlined_call_operand.vmem [shape: f32[64,32], index: 3, kind: input, shape index: {}]
  %s4 = inlined_call_operand.vmem [shape: f32[64,1], index: 4, kind: input, shape index: {}]
  %s5 = inlined_call_operand.vmem [shape: f32[32,64], index: 5, kind: input, shape index: {}]
  %s6 = inlined_call_operand.vmem [shape: f32[32,1], index: 6, kind: input, shape index: {}]
  %s7 = inlined_call_operand.vmem [shape: f32[32,1], index: 7, kind: input, shape index: {}]
  %s8 = inlined_call_operand.vmem [shape: f32[32,1], index: 8, kind: input, shape index: {}]
  %s9 = inlined_call_operand.hbm [shape: f32[1,256], index: 9, kind: output, shape index: {}]
  %s10 = sld [smem:[#allocation0]]
  $region107: #{tpu_custom_call.1} parent=0
    _
  %s12 = ssub.s32 1, %s10
  %s13 = scalar_select 0, %s12, %s10
  $region1: #{tpu_custom_call.1} parent=0
    #allocation2 [shape = 'u8[32768]{0}', space=vmem, size = 0x8000, scoped, tag = 'input window, operand 0']
    #allocation3 [shape = 'u8[1024]{0}', space=vmem, size = 0x400, scoped, tag = 'output window, operand 0']
    #allocation4 [shape = 's32[2]{0}', space=sflag, size = 0x8, scoped, tag = 'scoped memory for tpu_custom_call.1']
    %14 = vsyncpa [#allocation4], 0
    %s15 = scalar_lea.sflag [#allocation4], 1
    %16 = vsyncpa %s15, 0
    loop: start=0, step=1, limit=4
    $region2: #{tpu_custom_call.1} parent=1 // loop_pre_header
      _
    $region3: #{tpu_custom_call.1} parent=1 // loop_header
      %s18 = sphi 0, %s22
      %p19 = scmp.ge.s32.totalorder %s18, 4
      %s28 = sphi 0, %s30
      %s31 = sphi 0, %s28
      %s32 = sphi 0, %s31
      %s48 = sphi 0, %s32
      %s52 = sphi 0, %s52
      %s54 = sphi 0, %s52
      %s55 = sphi 0, %s54
      %s69 = sphi 0, %s55
      %s73 = sphi 0, %s73
      %s75 = sphi 0, %s73
      %s76 = sphi 0, %s75
      %s90 = sphi 0, %s76
      %s94 = sphi 0, %s94
      %s96 = sphi 0, %s94
      %s97 = sphi 0, %s96
      %s111 = sphi 0, %s97
      %s115 = sphi 0, %s115
      %s117 = sphi 0, %s115
      %s118 = sphi 0, %s117
      %s132 = sphi 0, %s118
      %s136 = sphi 0, %s136
      %s138 = sphi 0, %s136
      %s139 = sphi 0, %s138
      %s153 = sphi 0, %s139
      %s157 = sphi 0, %s157
      %s159 = sphi 0, %s157
      %s160 = sphi 0, %s159
      %s174 = sphi 0, %s160
      %s178 = sphi 0, %s178
      %s180 = sphi 0, %s178
      %s181 = sphi 0, %s180
      %s195 = sphi 0, %s181
      %s199 = sphi 0, %s199
      %s201 = sphi 0, %s199
      %s202 = sphi 0, %s201
      %s216 = sphi 0, %s202
      %s222 = sphi 0, %s224
      %s225 = sphi 0, %s222
      %s226 = sphi 0, %s225
      %s242 = sphi 0, %s226
    $region4: #{tpu_custom_call.1} parent=1 // loop_header_branch
      %21 = sbr.rel (%p19) target = $region8
    $region5: #{tpu_custom_call.1} parent=1 // loop_body
      %s23 = ssub.s32 %s18, 1
      %s24 = ssub.s32 %s18, 2
      %s25 = sadd.s32 %s18, 1
      %s26 = ssub.s32 %s18, %s25
      %p27 = scmp.eq.s32.totalorder %s26, 0
      %s29 = sadd.s32 %s28, 1
      %s30 = scalar_select %p27, %s28, %s29
      %p33 = pneg %p27
      %p34 = scmp.eq.s32.totalorder %s18, 1
      %p35 = por %p33, %p34
      %p36 = scmp.ne.s32.totalorder %s28, %s31
      %p37 = scmp.eq.s32.totalorder %s18, 0
      %p38 = por %p36, %p37
      %p39 = scmp.ne.s32.totalorder %s28, %s31
      %p40 = scmp.eq.s32.totalorder %s23, 1
      %p41 = por %p39, %p40
      %p42 = scmp.ne.s32.totalorder %s31, %s32
      %p43 = scmp.eq.s32.totalorder %s23, 0
      %p44 = por %p42, %p43
      %p45 = scmp.ne.s32.totalorder %s31, %s32
      %p46 = scmp.eq.s32.totalorder %s24, 1
      %p47 = por %p45, %p46
      %p49 = scmp.ne.s32.totalorder %s32, %s48
      %p50 = scmp.eq.s32.totalorder %s24, 0
      %p51 = por %p49, %p50
      %s53 = sadd.s32 %s52, 1
      %p56 = scmp.eq.s32.totalorder %s18, 1
      %p57 = scmp.ne.s32.totalorder %s52, %s54
      %p58 = scmp.eq.s32.totalorder %s18, 0
      %p59 = por %p57, %p58
      %p60 = scmp.ne.s32.totalorder %s52, %s54
      %p61 = scmp.eq.s32.totalorder %s23, 1
      %p62 = por %p60, %p61
      %p63 = scmp.ne.s32.totalorder %s54, %s55
      %p64 = scmp.eq.s32.totalorder %s23, 0
      %p65 = por %p63, %p64
      %p66 = scmp.ne.s32.totalorder %s54, %s55
      %p67 = scmp.eq.s32.totalorder %s24, 1
      %p68 = por %p66, %p67
      %p70 = scmp.ne.s32.totalorder %s55, %s69
      %p71 = scmp.eq.s32.totalorder %s24, 0
      %p72 = por %p70, %p71
      %s74 = sadd.s32 %s73, 1
      %p77 = scmp.eq.s32.totalorder %s18, 1
      %p78 = scmp.ne.s32.totalorder %s73, %s75
      %p79 = scmp.eq.s32.totalorder %s18, 0
      %p80 = por %p78, %p79
      %p81 = scmp.ne.s32.totalorder %s73, %s75
      %p82 = scmp.eq.s32.totalorder %s23, 1
      %p83 = por %p81, %p82
      %p84 = scmp.ne.s32.totalorder %s75, %s76
      %p85 = scmp.eq.s32.totalorder %s23, 0
      %p86 = por %p84, %p85
      %p87 = scmp.ne.s32.totalorder %s75, %s76
      %p88 = scmp.eq.s32.totalorder %s24, 1
      %p89 = por %p87, %p88
      %p91 = scmp.ne.s32.totalorder %s76, %s90
      %p92 = scmp.eq.s32.totalorder %s24, 0
      %p93 = por %p91, %p92
      %s95 = sadd.s32 %s94, 1
      %p98 = scmp.eq.s32.totalorder %s18, 1
      %p99 = scmp.ne.s32.totalorder %s94, %s96
      %p100 = scmp.eq.s32.totalorder %s18, 0
      %p101 = por %p99, %p100
      %p102 = scmp.ne.s32.totalorder %s94, %s96
      %p103 = scmp.eq.s32.totalorder %s23, 1
      %p104 = por %p102, %p103
      %p105 = scmp.ne.s32.totalorder %s96, %s97
      %p106 = scmp.eq.s32.totalorder %s23, 0
      %p107 = por %p105, %p106
      %p108 = scmp.ne.s32.totalorder %s96, %s97
      %p109 = scmp.eq.s32.totalorder %s24, 1
      %p110 = por %p108, %p109
      %p112 = scmp.ne.s32.totalorder %s97, %s111
      %p113 = scmp.eq.s32.totalorder %s24, 0
      %p114 = por %p112, %p113
      %s116 = sadd.s32 %s115, 1
      %p119 = scmp.eq.s32.totalorder %s18, 1
      %p120 = scmp.ne.s32.totalorder %s115, %s117
      %p121 = scmp.eq.s32.totalorder %s18, 0
      %p122 = por %p120, %p121
      %p123 = scmp.ne.s32.totalorder %s115, %s117
      %p124 = scmp.eq.s32.totalorder %s23, 1
      %p125 = por %p123, %p124
      %p126 = scmp.ne.s32.totalorder %s117, %s118
      %p127 = scmp.eq.s32.totalorder %s23, 0
      %p128 = por %p126, %p127
      %p129 = scmp.ne.s32.totalorder %s117, %s118
      %p130 = scmp.eq.s32.totalorder %s24, 1
      %p131 = por %p129, %p130
      %p133 = scmp.ne.s32.totalorder %s118, %s132
      %p134 = scmp.eq.s32.totalorder %s24, 0
      %p135 = por %p133, %p134
      %s137 = sadd.s32 %s136, 1
      %p140 = scmp.eq.s32.totalorder %s18, 1
      %p141 = scmp.ne.s32.totalorder %s136, %s138
      %p142 = scmp.eq.s32.totalorder %s18, 0
      %p143 = por %p141, %p142
      %p144 = scmp.ne.s32.totalorder %s136, %s138
      %p145 = scmp.eq.s32.totalorder %s23, 1
      %p146 = por %p144, %p145
      %p147 = scmp.ne.s32.totalorder %s138, %s139
      %p148 = scmp.eq.s32.totalorder %s23, 0
      %p149 = por %p147, %p148
      %p150 = scmp.ne.s32.totalorder %s138, %s139
      %p151 = scmp.eq.s32.totalorder %s24, 1
      %p152 = por %p150, %p151
      %p154 = scmp.ne.s32.totalorder %s139, %s153
      %p155 = scmp.eq.s32.totalorder %s24, 0
      %p156 = por %p154, %p155
      %s158 = sadd.s32 %s157, 1
      %p161 = scmp.eq.s32.totalorder %s18, 1
      %p162 = scmp.ne.s32.totalorder %s157, %s159
      %p163 = scmp.eq.s32.totalorder %s18, 0
      %p164 = por %p162, %p163
      %p165 = scmp.ne.s32.totalorder %s157, %s159
      %p166 = scmp.eq.s32.totalorder %s23, 1
      %p167 = por %p165, %p166
      %p168 = scmp.ne.s32.totalorder %s159, %s160
      %p169 = scmp.eq.s32.totalorder %s23, 0
      %p170 = por %p168, %p169
      %p171 = scmp.ne.s32.totalorder %s159, %s160
      %p172 = scmp.eq.s32.totalorder %s24, 1
      %p173 = por %p171, %p172
      %p175 = scmp.ne.s32.totalorder %s160, %s174
      %p176 = scmp.eq.s32.totalorder %s24, 0
      %p177 = por %p175, %p176
      %s179 = sadd.s32 %s178, 1
      %p182 = scmp.eq.s32.totalorder %s18, 1
      %p183 = scmp.ne.s32.totalorder %s178, %s180
      %p184 = scmp.eq.s32.totalorder %s18, 0
      %p185 = por %p183, %p184
      %p186 = scmp.ne.s32.totalorder %s178, %s180
      %p187 = scmp.eq.s32.totalorder %s23, 1
      %p188 = por %p186, %p187
      %p189 = scmp.ne.s32.totalorder %s180, %s181
      %p190 = scmp.eq.s32.totalorder %s23, 0
      %p191 = por %p189, %p190
      %p192 = scmp.ne.s32.totalorder %s180, %s181
      %p193 = scmp.eq.s32.totalorder %s24, 1
      %p194 = por %p192, %p193
      %p196 = scmp.ne.s32.totalorder %s181, %s195
      %p197 = scmp.eq.s32.totalorder %s24, 0
      %p198 = por %p196, %p197
      %s200 = sadd.s32 %s199, 1
      %p203 = scmp.eq.s32.totalorder %s18, 1
      %p204 = scmp.ne.s32.totalorder %s199, %s201
      %p205 = scmp.eq.s32.totalorder %s18, 0
      %p206 = por %p204, %p205
      %p207 = scmp.ne.s32.totalorder %s199, %s201
      %p208 = scmp.eq.s32.totalorder %s23, 1
      %p209 = por %p207, %p208
      %p210 = scmp.ne.s32.totalorder %s201, %s202
      %p211 = scmp.eq.s32.totalorder %s23, 0
      %p212 = por %p210, %p211
      %p213 = scmp.ne.s32.totalorder %s201, %s202
      %p214 = scmp.eq.s32.totalorder %s24, 1
      %p215 = por %p213, %p214
      %p217 = scmp.ne.s32.totalorder %s202, %s216
      %p218 = scmp.eq.s32.totalorder %s24, 0
      %p219 = por %p217, %p218
      %s220 = ssub.s32 %s18, %s25
      %p221 = scmp.eq.s32.totalorder %s220, 0
      %s223 = sadd.s32 %s222, 1
      %s224 = scalar_select %p221, %s222, %s223
      %p227 = pneg %p221
      %p228 = scmp.eq.s32.totalorder %s18, 1
      %p229 = por %p227, %p228
      %p230 = scmp.ne.s32.totalorder %s222, %s225
      %p231 = scmp.eq.s32.totalorder %s18, 0
      %p232 = por %p230, %p231
      %p233 = scmp.ne.s32.totalorder %s222, %s225
      %p234 = scmp.eq.s32.totalorder %s23, 1
      %p235 = por %p233, %p234
      %p236 = scmp.ne.s32.totalorder %s225, %s226
      %p237 = scmp.eq.s32.totalorder %s23, 0
      %p238 = por %p236, %p237
      %p239 = scmp.ne.s32.totalorder %s225, %s226
      %p240 = scmp.eq.s32.totalorder %s24, 1
      %p241 = por %p239, %p240
      %p243 = scmp.ne.s32.totalorder %s226, %s242
      %p244 = scmp.eq.s32.totalorder %s24, 0
      %p245 = por %p243, %p244
      %p246 = scmp.le.s32.totalorder 1, %s18
      %p247 = scmp.lt.s32.totalorder %s18, 3
      %p248 = pnand %p246, %p247
      %p249 = pneg %p248
      // Predicated region
      $region9: #{tpu_custom_call.1} parent=5 // pred_check
        _
      $region10: #{tpu_custom_call.1} parent=5 // pred_check_branch
        %251 = sbr.rel (%p248) target = $region12
      $region11: #{tpu_custom_call.1} parent=5 // pred_region
        %s252 = ssub.s32 %s18, 1
        // Predicated region
        $region13: #{tpu_custom_call.1} parent=11 // pred_check
          %p253 = pneg %p65
        $region14: #{tpu_custom_call.1} parent=11 // pred_check_branch
          %255 = sbr.rel (%p253) target = $region16
        $region15: #{tpu_custom_call.1} parent=11 // pred_region
          _
        $region16: #{tpu_custom_call.1} parent=11 // pred_fallthru
          _
        // Predicated region
        $region17: #{tpu_custom_call.1} parent=11 // pred_check
          %p256 = pneg %p86
        $region18: #{tpu_custom_call.1} parent=11 // pred_check_branch
          %258 = sbr.rel (%p256) target = $region20
        $region19: #{tpu_custom_call.1} parent=11 // pred_region
          _
        $region20: #{tpu_custom_call.1} parent=11 // pred_fallthru
          _
        // Predicated region
        $region21: #{tpu_custom_call.1} parent=11 // pred_check
          %p259 = pneg %p107
        $region22: #{tpu_custom_call.1} parent=11 // pred_check_branch
          %261 = sbr.rel (%p259) target = $region24
        $region23: #{tpu_custom_call.1} parent=11 // pred_region
          _
        $region24: #{tpu_custom_call.1} parent=11 // pred_fallthru
          _
        // Predicated region
        $region25: #{tpu_custom_call.1} parent=11 // pred_check
          %p262 = pneg %p128
        $region26: #{tpu_custom_call.1} parent=11 // pred_check_branch
          %264 = sbr.rel (%p262) target = $region28
        $region27: #{tpu_custom_call.1} parent=11 // pred_region
          _
        $region28: #{tpu_custom_call.1} parent=11 // pred_fallthru
          _
        // Predicated region
        $region29: #{tpu_custom_call.1} parent=11 // pred_check
          %p265 = pneg %p149
        $region30: #{tpu_custom_call.1} parent=11 // pred_check_branch
          %267 = sbr.rel (%p265) target = $region32
        $region31: #{tpu_custom_call.1} parent=11 // pred_region
          _
        $region32: #{tpu_custom_call.1} parent=11 // pred_fallthru
          _
        // Predicated region
        $region33: #{tpu_custom_call.1} parent=11 // pred_check
          %p268 = pneg %p170
        $region34: #{tpu_custom_call.1} parent=11 // pred_check_branch
          %270 = sbr.rel (%p268) target = $region36
        $region35: #{tpu_custom_call.1} parent=11 // pred_region
          _
        $region36: #{tpu_custom_call.1} parent=11 // pred_fallthru
          _
        // Predicated region
        $region37: #{tpu_custom_call.1} parent=11 // pred_check
          %p271 = pneg %p191
        $region38: #{tpu_custom_call.1} parent=11 // pred_check_branch
          %273 = sbr.rel (%p271) target = $region40
        $region39: #{tpu_custom_call.1} parent=11 // pred_region
          _
        $region40: #{tpu_custom_call.1} parent=11 // pred_fallthru
          _
        // Predicated region
        $region41: #{tpu_custom_call.1} parent=11 // pred_check
          %p274 = pneg %p212
        $region42: #{tpu_custom_call.1} parent=11 // pred_check_branch
          %276 = sbr.rel (%p274) target = $region44
        $region43: #{tpu_custom_call.1} parent=11 // pred_region
          _
        $region44: #{tpu_custom_call.1} parent=11 // pred_fallthru
          _
      $region12: #{tpu_custom_call.1} parent=5 // pred_fallthru
        _
      %p277 = scmp.lt.s32.totalorder %s18, 2
      // Predicated region
      $region45: #{tpu_custom_call.1} parent=5 // pred_check
        %p278 = pneg %p277
      $region46: #{tpu_custom_call.1} parent=5 // pred_check_branch
        %280 = sbr.rel (%p278) target = $region48
      $region47: #{tpu_custom_call.1} parent=5 // pred_region
        // Predicated region
        $region49: #{tpu_custom_call.1} parent=47 // pred_check
          %p281 = pneg %p38
        $region50: #{tpu_custom_call.1} parent=47 // pred_check_branch
          %283 = sbr.rel (%p281) target = $region52
        $region51: #{tpu_custom_call.1} parent=47 // pred_region
          %s284 = sand.u32 %s28, 1
          %s285 = sand.u32 %s28, 1
          %s286 = smul.addr %s285, 32
          %s287 = scalar_lea.vmem [#allocation2], %s286
          %s288 = smul.addr %s18, 8
          %s289 = scalar_lea.vmem %s0, %s288
          // Predicated region
          $region53: #{tpu_custom_call.1} parent=51 // pred_check
            _
          $region54: #{tpu_custom_call.1} parent=51 // pred_check_branch
            %291 = sbr.rel (0) target = $region56
          $region55: #{tpu_custom_call.1} parent=51 // pred_region
            // Predicated region
            $region57: #{tpu_custom_call.1} parent=55 // pred_check
              _
            $region58: #{tpu_custom_call.1} parent=55 // pred_check_branch
              %293 = sbr.rel (0) target = $region60
            $region59: #{tpu_custom_call.1} parent=55 // pred_region
              // Predicated region
              $region72: #{tpu_custom_call.1} parent=59 // pred_check
                _
              $region73: #{tpu_custom_call.1} parent=59 // pred_check_branch
                %314 = sbr.rel (0) target = $region75
              $region74: #{tpu_custom_call.1} parent=59 // pred_region
                loop: start=0, step=1, limit=1
                $region76: #{tpu_custom_call.1} parent=74 // loop_pre_header
                  _
                $region77: #{tpu_custom_call.1} parent=74 // loop_header
                  %s316 = sphi 0, %s320
                  %p317 = scmp.ge.s32.totalorder %s316, 1
                  %s321 = sphi %s289, %s289
                  %s322 = sphi %s287, %s287
                $region78: #{tpu_custom_call.1} parent=74 // loop_header_branch
                  %319 = sbr.rel (%p317) target = $region82
                $region79: #{tpu_custom_call.1} parent=74 // loop_body
                  %v323 = vld [vmem:[%s321] sm:$0xff]
                  %324 = vst [vmem:[%s322] sm:$0xff] %v323
                  %v325 = vld [vmem:[%s321 + $0x10] sm:$0xff]
                  %326 = vst [vmem:[%s322 + $0x8] sm:$0xff] %v325
                  %v327 = vld [vmem:[%s321 + $0x20] sm:$0xff]
                  %328 = vst [vmem:[%s322 + $0x10] sm:$0xff] %v327
                  %v329 = vld [vmem:[%s321 + $0x30] sm:$0xff]
                  %330 = vst [vmem:[%s322 + $0x18] sm:$0xff] %v329
                $region80: #{tpu_custom_call.1} parent=74 // loop_footer
                  %s320 = sadd.s32 1, %s316
                $region81: #{tpu_custom_call.1} parent=74 // loop_footer_branch
                  %315 = sbr.rel target = $region77
                $region82: #{tpu_custom_call.1} parent=74 // loop_exit
                  _
              $region75: #{tpu_custom_call.1} parent=59 // pred_fallthru
                _
              // Predicated region
              $region83: #{tpu_custom_call.1} parent=59 // pred_check
                _
              $region84: #{tpu_custom_call.1} parent=59 // pred_check_branch
                %332 = sbr.rel target = $region86
              $region85: #{tpu_custom_call.1} parent=59 // pred_region
                _
              $region86: #{tpu_custom_call.1} parent=59 // pred_fallthru
                _
            $region60: #{tpu_custom_call.1} parent=55 // pred_fallthru
              _
            // Predicated region
            $region61: #{tpu_custom_call.1} parent=55 // pred_check
              _
            $region62: #{tpu_custom_call.1} parent=55 // pred_check_branch
              %295 = sbr.rel target = $region64
            $region63: #{tpu_custom_call.1} parent=55 // pred_region
              loop: start=0, step=1, limit=1
              $region65: #{tpu_custom_call.1} parent=63 // loop_pre_header
                _
              $region66: #{tpu_custom_call.1} parent=63 // loop_header
                %s298 = sphi 0, %s302
                %p299 = scmp.ge.s32.totalorder %s298, 1
                %s303 = sphi %s289, %s289
                %s304 = sphi %s287, %s287
              $region67: #{tpu_custom_call.1} parent=63 // loop_header_branch
                %301 = sbr.rel (%p299) target = $region71
              $region68: #{tpu_custom_call.1} parent=63 // loop_body
                %v305 = vld [vmem:[%s303] sm:$0xff]
                %306 = vst [vmem:[%s304] sm:$0xff] %v305
                %v307 = vld [vmem:[%s303 + $0x10] sm:$0xff]
                %308 = vst [vmem:[%s304 + $0x8] sm:$0xff] %v307
                %v309 = vld [vmem:[%s303 + $0x20] sm:$0xff]
                %310 = vst [vmem:[%s304 + $0x10] sm:$0xff] %v309
                %v311 = vld [vmem:[%s303 + $0x30] sm:$0xff]
                %312 = vst [vmem:[%s304 + $0x18] sm:$0xff] %v311
              $region69: #{tpu_custom_call.1} parent=63 // loop_footer
                %s302 = sadd.s32 1, %s298
              $region70: #{tpu_custom_call.1} parent=63 // loop_footer_branch
                %297 = sbr.rel target = $region66
              $region71: #{tpu_custom_call.1} parent=63 // loop_exit
                _
            $region64: #{tpu_custom_call.1} parent=55 // pred_fallthru
              _
          $region56: #{tpu_custom_call.1} parent=51 // pred_fallthru
            _
          %333 = vnop
        $region52: #{tpu_custom_call.1} parent=47 // pred_fallthru
          _
      $region48: #{tpu_custom_call.1} parent=5 // pred_fallthru
        _
      %p334 = scmp.le.s32.totalorder 1, %s18
      %p335 = scmp.lt.s32.totalorder %s18, 3
      %p336 = pnand %p334, %p335
      %p337 = pneg %p336
      // Predicated region
      $region87: #{tpu_custom_call.1} parent=5 // pred_check
        _
      $region88: #{tpu_custom_call.1} parent=5 // pred_check_branch
        %339 = sbr.rel (%p336) target = $region90
      $region89: #{tpu_custom_call.1} parent=5 // pred_region
        %s340 = ssub.s32 %s18, 1
        %s341 = sand.u32 %s31, 1
        %s342 = sand.u32 %s31, 1
        %s343 = smul.addr %s342, 32
        %s344 = scalar_lea.vmem [#allocation2], %s343
        // Predicated region
        $region91: #{tpu_custom_call.1} parent=89 // pred_check
          %p345 = pneg %p44
        $region92: #{tpu_custom_call.1} parent=89 // pred_check_branch
          %347 = sbr.rel (%p345) target = $region94
        $region93: #{tpu_custom_call.1} parent=89 // pred_region
          _
        $region94: #{tpu_custom_call.1} parent=89 // pred_fallthru
          _
        %s348 = sand.u32 %s31, 1
        %s349 = sand.u32 %s31, 1
        %s350 = smul.addr %s349, 32
        %s351 = scalar_lea.vmem [#allocation2], %s350
        %p352 = pneg %p44
        %p353 = pneg %p41
        %p354 = pneg %p65
        %p355 = pneg %p62
        %p356 = pneg %p86
        %p357 = pneg %p83
        %p358 = pneg %p107
        %p359 = pneg %p104
        %p360 = pneg %p128
        %p361 = pneg %p125
        %p362 = pneg %p149
        %p363 = pneg %p146
        %p364 = pneg %p170
        %p365 = pneg %p167
        %p366 = pneg %p191
        %p367 = pneg %p188
        %p368 = pneg %p212
        %p369 = pneg %p209
        %p370 = pneg %p238
        %p371 = pneg %p235
        %s372 = sand.u32 %s225, 1
        %s373 = scalar_lea.sflag [#allocation4], %s372
        %s374 = sand.u32 %s225, 1
        %s375 = scalar_lea.vmem [#allocation3], %s374
        %v376 = vld [vmem:[%s344] sm:$0xff]
        %v377 = vld [vmem:[%s344 + $0x8] sm:$0xff]
        %v378 = vld [vmem:[%s344 + $0x10] sm:$0xff]
        %v379 = vld [vmem:[%s344 + $0x18] sm:$0xff]
        %v380 = vld [vmem:[%s1] sm:$0xff]
        %v381 = vld [vmem:[%s1 + $0x8] sm:$0xff]
        %v382 = vld [vmem:[%s1 + $0x10] sm:$0xff]
        %v383 = vld [vmem:[%s1 + $0x18] sm:$0xff]
        %v384 = vld [vmem:[%s2] sm:$0xff]
        %v385 = vld [vmem:[%s2 + $0x8] sm:$0xff]
        %v386 = vld [vmem:[%s2 + $0x10] sm:$0xff]
        %v387 = vld [vmem:[%s2 + $0x18] sm:$0xff]
        %389 = vset.pattern.permute.xlu0 0
        %390 = vperm.xlu0 %389, %v380
        %v391 = vpop.permute.xlu0 %390
        %394 = vset.pattern.permute.xlu0 0
        %395 = vperm.xlu0 %394, %v381
        %v396 = vpop.permute.xlu0 %395
        %399 = vset.pattern.permute.xlu0 0
        %400 = vperm.xlu0 %399, %v382
        %v401 = vpop.permute.xlu0 %400
        %404 = vset.pattern.permute.xlu0 0
        %405 = vperm.xlu0 %404, %v383
        %v406 = vpop.permute.xlu0 %405
        %v408 = vmul.f32 %v376, %v391
        %v409 = vmul.f32 %v377, %v396
        %v410 = vmul.f32 %v378, %v401
        %v411 = vmul.f32 %v379, %v406
        %v412 = vadd.f32 %v408, %v409
        %v413 = vadd.f32 %v412, %v410
        %v414 = vadd.f32 %v413, %v411
        %v415 = vrot.slane %v414, 4
        %v416 = vadd.f32 %v414, %v415
        %v417 = vrot.slane %v416, 2
        %v418 = vadd.f32 %v416, %v417
        %v419 = vrot.slane %v418, 1
        %v420 = vadd.f32 %v418, %v419
        %v421 = vmul.f32 %v376, %v420
        %v422 = vmul.f32 %v377, %v420
        %v423 = vmul.f32 %v378, %v420
        %v424 = vmul.f32 %v379, %v420
        %426 = vset.pattern.permute.xlu0 0
        %427 = vperm.xlu0 %426, %v384
        %v428 = vpop.permute.xlu0 %427
        %431 = vset.pattern.permute.xlu0 0
        %432 = vperm.xlu0 %431, %v385
        %v433 = vpop.permute.xlu0 %432
        %436 = vset.pattern.permute.xlu0 0
        %437 = vperm.xlu0 %436, %v386
        %v438 = vpop.permute.xlu0 %437
        %441 = vset.pattern.permute.xlu0 0
        %442 = vperm.xlu0 %441, %v387
        %v443 = vpop.permute.xlu0 %442
        %v445 = vadd.f32 %v421, %v428
        %v446 = vadd.f32 %v422, %v433
        %v447 = vadd.f32 %v423, %v438
        %v448 = vadd.f32 %v424, %v443
        %v449 = vadd.f32 %v445, %v376
        %v450 = vadd.f32 %v446, %v377
        %v451 = vadd.f32 %v447, %v378
        %v452 = vadd.f32 %v448, %v379
        %453 = vset.pattern.permute.xlu0 1
        %454 = vperm.xlu0 %453, %v380
        %v455 = vpop.permute.xlu0 %454
        %457 = vset.pattern.permute.xlu0 1
        %458 = vperm.xlu0 %457, %v381
        %v459 = vpop.permute.xlu0 %458
        %461 = vset.pattern.permute.xlu0 1
        %462 = vperm.xlu0 %461, %v382
        %v463 = vpop.permute.xlu0 %462
        %465 = vset.pattern.permute.xlu0 1
        %466 = vperm.xlu0 %465, %v383
        %v467 = vpop.permute.xlu0 %466
        %v469 = vmul.f32 %v449, %v455
        %v470 = vmul.f32 %v450, %v459
        %v471 = vmul.f32 %v451, %v463
        %v472 = vmul.f32 %v452, %v467
        %v473 = vadd.f32 %v469, %v470
        %v474 = vadd.f32 %v473, %v471
        %v475 = vadd.f32 %v474, %v472
        %v476 = vrot.slane %v475, 4
        %v477 = vadd.f32 %v475, %v476
        %v478 = vrot.slane %v477, 2
        %v479 = vadd.f32 %v477, %v478
        %v480 = vrot.slane %v479, 1
        %v481 = vadd.f32 %v479, %v480
        %v482 = vmul.f32 %v376, %v481
        %v483 = vmul.f32 %v377, %v481
        %v484 = vmul.f32 %v378, %v481
        %v485 = vmul.f32 %v379, %v481
        %486 = vset.pattern.permute.xlu0 1
        %487 = vperm.xlu0 %486, %v384
        %v488 = vpop.permute.xlu0 %487
        %490 = vset.pattern.permute.xlu0 1
        %491 = vperm.xlu0 %490, %v385
        %v492 = vpop.permute.xlu0 %491
        %494 = vset.pattern.permute.xlu0 1
        %495 = vperm.xlu0 %494, %v386
        %v496 = vpop.permute.xlu0 %495
        %498 = vset.pattern.permute.xlu0 1
        %499 = vperm.xlu0 %498, %v387
        %v500 = vpop.permute.xlu0 %499
        %v502 = vadd.f32 %v482, %v488
        %v503 = vadd.f32 %v483, %v492
        %v504 = vadd.f32 %v484, %v496
        %v505 = vadd.f32 %v485, %v500
        %v506 = vadd.f32 %v502, %v449
        %v507 = vadd.f32 %v503, %v450
        %v508 = vadd.f32 %v504, %v451
        %v509 = vadd.f32 %v505, %v452
        %510 = vset.pattern.permute.xlu0 2
        %511 = vperm.xlu0 %510, %v380
        %v512 = vpop.permute.xlu0 %511
        %514 = vset.pattern.permute.xlu0 2
        %515 = vperm.xlu0 %514, %v381
        %v516 = vpop.permute.xlu0 %515
        %518 = vset.pattern.permute.xlu0 2
        %519 = vperm.xlu0 %518, %v382
        %v520 = vpop.permute.xlu0 %519
        %522 = vset.pattern.permute.xlu0 2
        %523 = vperm.xlu0 %522, %v383
        %v524 = vpop.permute.xlu0 %523
        %v526 = vmul.f32 %v506, %v512
        %v527 = vmul.f32 %v507, %v516
        %v528 = vmul.f32 %v508, %v520
        %v529 = vmul.f32 %v509, %v524
        %v530 = vadd.f32 %v526, %v527
        %v531 = vadd.f32 %v530, %v528
        %v532 = vadd.f32 %v531, %v529
        %v533 = vrot.slane %v532, 4
        %v534 = vadd.f32 %v532, %v533
        %v535 = vrot.slane %v534, 2
        %v536 = vadd.f32 %v534, %v535
        %v537 = vrot.slane %v536, 1
        %v538 = vadd.f32 %v536, %v537
        %v539 = vmul.f32 %v376, %v538
        %v540 = vmul.f32 %v377, %v538
        %v541 = vmul.f32 %v378, %v538
        %v542 = vmul.f32 %v379, %v538
        %543 = vset.pattern.permute.xlu0 2
        %544 = vperm.xlu0 %543, %v384
        %v545 = vpop.permute.xlu0 %544
        %547 = vset.pattern.permute.xlu0 2
        %548 = vperm.xlu0 %547, %v385
        %v549 = vpop.permute.xlu0 %548
        %551 = vset.pattern.permute.xlu0 2
        %552 = vperm.xlu0 %551, %v386
        %v553 = vpop.permute.xlu0 %552
        %555 = vset.pattern.permute.xlu0 2
        %556 = vperm.xlu0 %555, %v387
        %v557 = vpop.permute.xlu0 %556
        %v559 = vadd.f32 %v539, %v545
        %v560 = vadd.f32 %v540, %v549
        %v561 = vadd.f32 %v541, %v553
        %v562 = vadd.f32 %v542, %v557
        %v563 = vadd.f32 %v559, %v506
        %v564 = vadd.f32 %v560, %v507
        %v565 = vadd.f32 %v561, %v508
        %v566 = vadd.f32 %v562, %v509
        %v567 = vld [vmem:[%s3] sm:$0xff]
        %v568 = vld [vmem:[%s3 + $0x8] sm:$0xff]
        %v569 = vld [vmem:[%s3 + $0x10] sm:$0xff]
        %v570 = vld [vmem:[%s3 + $0x18] sm:$0xff]
        %v571 = vld [vmem:[%s3 + $0x20] sm:$0xff]
        %v572 = vld [vmem:[%s3 + $0x28] sm:$0xff]
        %v573 = vld [vmem:[%s3 + $0x30] sm:$0xff]
        %v574 = vld [vmem:[%s3 + $0x38] sm:$0xff]
        %v575 = vld [vmem:[%s4] sm:$0xff]
        %v576 = vld [vmem:[%s4 + $0x8] sm:$0xff]
        %v577 = vld [vmem:[%s4 + $0x10] sm:$0xff]
        %v578 = vld [vmem:[%s4 + $0x18] sm:$0xff]
        %v579 = vld [vmem:[%s4 + $0x20] sm:$0xff]
        %v580 = vld [vmem:[%s4 + $0x28] sm:$0xff]
        %v581 = vld [vmem:[%s4 + $0x30] sm:$0xff]
        %v582 = vld [vmem:[%s4 + $0x38] sm:$0xff]
        %584 = vset.pattern.permute.xlu0 0
        %585 = vperm.xlu0 %584, %v575
        %v586 = vpop.permute.xlu0 %585
        %589 = vset.pattern.permute.xlu0 0
        %590 = vperm.xlu0 %589, %v576
        %v591 = vpop.permute.xlu0 %590
        %594 = vset.pattern.permute.xlu0 0
        %595 = vperm.xlu0 %594, %v577
        %v596 = vpop.permute.xlu0 %595
        %599 = vset.pattern.permute.xlu0 0
        %600 = vperm.xlu0 %599, %v578
        %v601 = vpop.permute.xlu0 %600
        %604 = vset.pattern.permute.xlu0 0
        %605 = vperm.xlu0 %604, %v579
        %v606 = vpop.permute.xlu0 %605
        %609 = vset.pattern.permute.xlu0 0
        %610 = vperm.xlu0 %609, %v580
        %v611 = vpop.permute.xlu0 %610
        %614 = vset.pattern.permute.xlu0 0
        %615 = vperm.xlu0 %614, %v581
        %v616 = vpop.permute.xlu0 %615
        %619 = vset.pattern.permute.xlu0 0
        %620 = vperm.xlu0 %619, %v582
        %v621 = vpop.permute.xlu0 %620
        %vm623 = vcmask 261120
        %v625 = vsel %vm623, %v567, 0
        %v628 = vsel %vm623, %v568, 0
        %v631 = vsel %vm623, %v569, 0
        %v634 = vsel %vm623, %v570, 0
        %v637 = vsel %vm623, %v571, 0
        %v640 = vsel %vm623, %v572, 0
        %v643 = vsel %vm623, %v573, 0
        %v646 = vsel %vm623, %v574, 0
        %648 = vmatprep.subr.mxu0 0.0
        %649 = vmatpush1.msra.mxu0 %v376
        %650 = vmatprep.subr.mxu0 0.0
        %651 = vmatpush1.msra.mxu0 %v377
        %652 = vmatprep.subr.mxu0 0.0
        %653 = vmatpush1.msra.mxu0 %v378
        %654 = vmatprep.subr.mxu0 0.0
        %655 = vmatpush1.msra.mxu0 %v379
        %656 = vmatprep.subr.mxu0 0.0
        %657 = vmatpush1.msra.mxu0 0.0
        %658 = vmatprep.subr.mxu0 0.0
        %659 = vmatpush1.msra.mxu0 0.0
        %660 = vmatprep.subr.mxu0 0.0
        %661 = vmatpush1.msra.mxu0 0.0
        %662 = vmatprep.subr.mxu0 0.0
        %663 = vmatpush1.msra.mxu0 0.0
        %664 = vmatprep.subr.mxu0 0.0
        %665 = vmatpush1.msra.mxu0 0.0
        %666 = vmatprep.subr.mxu0 0.0
        %667 = vmatpush1.msra.mxu0 0.0
        %668 = vmatprep.subr.mxu0 0.0
        %669 = vmatpush1.msra.mxu0 0.0
        %670 = vmatprep.subr.mxu0 0.0
        %671 = vmatpush1.msra.mxu0 0.0
        %672 = vmatprep.subr.mxu0 0.0
        %673 = vmatpush1.msra.mxu0 0.0
        %674 = vmatprep.subr.mxu0 0.0
        %675 = vmatpush1.msra.mxu0 0.0
        %676 = vmatprep.subr.mxu0 0.0
        %677 = vmatpush1.msra.mxu0 0.0
        %678 = vmatprep.subr.mxu0 0.0
        %679 = vmatpush1.msra.mxu0 0.0
        %680 = vmatprep.subr.mxu0 0.0
        %681 = vmatpush1.msra.mxu0 0.0
        %682 = vmatprep.subr.mxu0 0.0
        %683 = vmatpush1.msra.mxu0 0.0
        %684 = vmatprep.subr.mxu0 0.0
        %685 = vmatpush1.msra.mxu0 0.0
        %686 = vmatprep.subr.mxu0 0.0
        %687 = vmatpush1.msra.mxu0 0.0
        %688 = vmatprep.subr.mxu0 0.0
        %689 = vmatpush1.msra.mxu0 0.0
        %690 = vmatprep.subr.mxu0 0.0
        %691 = vmatpush1.msra.mxu0 0.0
        %692 = vmatprep.subr.mxu0 0.0
        %693 = vmatpush1.msra.mxu0 0.0
        %694 = vmatprep.subr.mxu0 0.0
        %695 = vmatpush1.msra.mxu0 0.0
        %696 = vmatprep.subr.mxu0 0.0
        %697 = vmatpush1.msra.mxu0 0.0
        %698 = vmatprep.subr.mxu0 0.0
        %699 = vmatpush1.msra.mxu0 0.0
        %700 = vmatprep.subr.mxu0 0.0
        %701 = vmatpush1.msra.mxu0 0.0
        %702 = vmatprep.subr.mxu0 0.0
        %703 = vmatpush1.msra.mxu0 0.0
        %704 = vmatprep.subr.mxu0 0.0
        %705 = vmatpush1.msra.mxu0 0.0
        %706 = vmatprep.subr.mxu0 0.0
        %707 = vmatpush1.msra.mxu0 0.0
        %708 = vmatprep.subr.mxu0 0.0
        %709 = vmatpush1.msra.mxu0 0.0
        %710 = vmatprep.subr.mxu0 0.0
        %711 = vmatpush1.msra.mxu0 0.0
        %712 = vmatprep.mubr.f32.mxu0 0.0
        %713 = vmatmul.mubr.f32.gmra.mrb[0].mxu0 %v625
        %v714 = vpop.f32.mrb[0].mxu0
        %v715 = vadd.f32 %v586, %v714
        %v716 = vpop.f32.mrb[0].mxu0
        %717 = vmatprep.mubr.f32.mxu0 0.0
        %718 = vmatmul.mubr.f32.gmra.mrb[0].mxu0 %v628
        %v719 = vpop.f32.mrb[0].mxu0
        %v720 = vadd.f32 %v591, %v719
        %v721 = vpop.f32.mrb[0].mxu0
        %722 = vmatprep.mubr.f32.mxu0 0.0
        %723 = vmatmul.mubr.f32.gmra.mrb[0].mxu0 %v631
        %v724 = vpop.f32.mrb[0].mxu0
        %v725 = vadd.f32 %v596, %v724
        %v726 = vpop.f32.mrb[0].mxu0
        %727 = vmatprep.mubr.f32.mxu0 0.0
        %728 = vmatmul.mubr.f32.gmra.mrb[0].mxu0 %v634
        %v729 = vpop.f32.mrb[0].mxu0
        %v730 = vadd.f32 %v601, %v729
        %v731 = vpop.f32.mrb[0].mxu0
        %732 = vmatprep.mubr.f32.mxu0 0.0
        %733 = vmatmul.mubr.f32.gmra.mrb[0].mxu0 %v637
        %v734 = vpop.f32.mrb[0].mxu0
        %v735 = vadd.f32 %v606, %v734
        %v736 = vpop.f32.mrb[0].mxu0
        %737 = vmatprep.mubr.f32.mxu0 0.0
        %738 = vmatmul.mubr.f32.gmra.mrb[0].mxu0 %v640
        %v739 = vpop.f32.mrb[0].mxu0
        %v740 = vadd.f32 %v611, %v739
        %v741 = vpop.f32.mrb[0].mxu0
        %742 = vmatprep.mubr.f32.mxu0 0.0
        %743 = vmatmul.mubr.f32.gmra.mrb[0].mxu0 %v643
        %v744 = vpop.f32.mrb[0].mxu0
        %v745 = vadd.f32 %v616, %v744
        %v746 = vpop.f32.mrb[0].mxu0
        %747 = vmatprep.mubr.f32.mxu0 0.0
        %748 = vmatmul.mubr.f32.gmra.mrb[0].mxu0 %v646
        %v749 = vpop.f32.mrb[0].mxu0
        %v750 = vadd.f32 %v621, %v749
        %v751 = vpop.f32.mrb[0].mxu0
        %752 = vdwg.mxu0
        %v753 = vmax.f32 %v715, 0.0
        %v754 = vmax.f32 %v720, 0.0
        %v755 = vmax.f32 %v725, 0.0
        %v756 = vmax.f32 %v730, 0.0
        %v757 = vmax.f32 %v735, 0.0
        %v758 = vmax.f32 %v740, 0.0
        %v759 = vmax.f32 %v745, 0.0
        %v760 = vmax.f32 %v750, 0.0
        %v761 = vld [vmem:[%s5] sm:$0xff]
        %v762 = vld [vmem:[%s5 + $0x8] sm:$0xff]
        %v763 = vld [vmem:[%s5 + $0x10] sm:$0xff]
        %v764 = vld [vmem:[%s5 + $0x18] sm:$0xff]
        %v765 = vld [vmem:[%s6] sm:$0xff]
        %v766 = vld [vmem:[%s6 + $0x8] sm:$0xff]
        %v767 = vld [vmem:[%s6 + $0x10] sm:$0xff]
        %v768 = vld [vmem:[%s6 + $0x18] sm:$0xff]
        %770 = vset.pattern.permute.xlu0 0
        %771 = vperm.xlu0 %770, %v765
        %v772 = vpop.permute.xlu0 %771
        %775 = vset.pattern.permute.xlu0 0
        %776 = vperm.xlu0 %775, %v766
        %v777 = vpop.permute.xlu0 %776
        %780 = vset.pattern.permute.xlu0 0
        %781 = vperm.xlu0 %780, %v767
        %v782 = vpop.permute.xlu0 %781
        %785 = vset.pattern.permute.xlu0 0
        %786 = vperm.xlu0 %785, %v768
        %v787 = vpop.permute.xlu0 %786
        %vm789 = vcmask 523264
        %v791 = vsel %vm789, %v761, 0
        %v794 = vsel %vm789, %v762, 0
        %v797 = vsel %vm789, %v763, 0
        %v800 = vsel %vm789, %v764, 0
        %802 = vmatprep.subr.mxu0 0.0
        %803 = vmatpush1.msra.mxu0 %v753
        %804 = vmatprep.subr.mxu0 0.0
        %805 = vmatpush1.msra.mxu0 %v754
        %806 = vmatprep.subr.mxu0 0.0
        %807 = vmatpush1.msra.mxu0 %v755
        %808 = vmatprep.subr.mxu0 0.0
        %809 = vmatpush1.msra.mxu0 %v756
        %810 = vmatprep.subr.mxu0 0.0
        %811 = vmatpush1.msra.mxu0 %v757
        %812 = vmatprep.subr.mxu0 0.0
        %813 = vmatpush1.msra.mxu0 %v758
        %814 = vmatprep.subr.mxu0 0.0
        %815 = vmatpush1.msra.mxu0 %v759
        %816 = vmatprep.subr.mxu0 0.0
        %817 = vmatpush1.msra.mxu0 %v760
        %818 = vmatprep.subr.mxu0 0.0
        %819 = vmatpush1.msra.mxu0 0.0
        %820 = vmatprep.subr.mxu0 0.0
        %821 = vmatpush1.msra.mxu0 0.0
        %822 = vmatprep.subr.mxu0 0.0
        %823 = vmatpush1.msra.mxu0 0.0
        %824 = vmatprep.subr.mxu0 0.0
        %825 = vmatpush1.msra.mxu0 0.0
        %826 = vmatprep.subr.mxu0 0.0
        %827 = vmatpush1.msra.mxu0 0.0
        %828 = vmatprep.subr.mxu0 0.0
        %829 = vmatpush1.msra.mxu0 0.0
        %830 = vmatprep.subr.mxu0 0.0
        %831 = vmatpush1.msra.mxu0 0.0
        %832 = vmatprep.subr.mxu0 0.0
        %833 = vmatpush1.msra.mxu0 0.0
        %834 = vmatprep.subr.mxu0 0.0
        %835 = vmatpush1.msra.mxu0 0.0
        %836 = vmatprep.subr.mxu0 0.0
        %837 = vmatpush1.msra.mxu0 0.0
        %838 = vmatprep.subr.mxu0 0.0
        %839 = vmatpush1.msra.mxu0 0.0
        %840 = vmatprep.subr.mxu0 0.0
        %841 = vmatpush1.msra.mxu0 0.0
        %842 = vmatprep.subr.mxu0 0.0
        %843 = vmatpush1.msra.mxu0 0.0
        %844 = vmatprep.subr.mxu0 0.0
        %845 = vmatpush1.msra.mxu0 0.0
        %846 = vmatprep.subr.mxu0 0.0
        %847 = vmatpush1.msra.mxu0 0.0
        %848 = vmatprep.subr.mxu0 0.0
        %849 = vmatpush1.msra.mxu0 0.0
        %850 = vmatprep.subr.mxu0 0.0
        %851 = vmatpush1.msra.mxu0 0.0
        %852 = vmatprep.subr.mxu0 0.0
        %853 = vmatpush1.msra.mxu0 0.0
        %854 = vmatprep.subr.mxu0 0.0
        %855 = vmatpush1.msra.mxu0 0.0
        %856 = vmatprep.subr.mxu0 0.0
        %857 = vmatpush1.msra.mxu0 0.0
        %858 = vmatprep.subr.mxu0 0.0
        %859 = vmatpush1.msra.mxu0 0.0
        %860 = vmatprep.subr.mxu0 0.0
        %861 = vmatpush1.msra.mxu0 0.0
        %862 = vmatprep.subr.mxu0 0.0
        %863 = vmatpush1.msra.mxu0 0.0
        %864 = vmatprep.subr.mxu0 0.0
        %865 = vmatpush1.msra.mxu0 0.0
        %866 = vmatprep.mubr.f32.mxu0 0.0
        %867 = vmatmul.mubr.f32.gmra.mrb[0].mxu0 %v791
        %v868 = vpop.f32.mrb[0].mxu0
        %v869 = vadd.f32 %v772, %v868
        %v870 = vpop.f32.mrb[0].mxu0
        %871 = vmatprep.mubr.f32.mxu0 0.0
        %872 = vmatmul.mubr.f32.gmra.mrb[0].mxu0 %v794
        %v873 = vpop.f32.mrb[0].mxu0
        %v874 = vadd.f32 %v777, %v873
        %v875 = vpop.f32.mrb[0].mxu0
        %876 = vmatprep.mubr.f32.mxu0 0.0
        %877 = vmatmul.mubr.f32.gmra.mrb[0].mxu0 %v797
        %v878 = vpop.f32.mrb[0].mxu0
        %v879 = vadd.f32 %v782, %v878
        %v880 = vpop.f32.mrb[0].mxu0
        %881 = vmatprep.mubr.f32.mxu0 0.0
        %882 = vmatmul.mubr.f32.gmra.mrb[0].mxu0 %v800
        %v883 = vpop.f32.mrb[0].mxu0
        %v884 = vadd.f32 %v787, %v883
        %v885 = vpop.f32.mrb[0].mxu0
        %886 = vdwg.mxu0
        %v887 = vmax.f32 %v869, 0.0
        %v888 = vmax.f32 %v874, 0.0
        %v889 = vmax.f32 %v879, 0.0
        %v890 = vmax.f32 %v884, 0.0
        %v891 = vld [vmem:[%s7] sm:$0xff]
        %v892 = vld [vmem:[%s7 + $0x8] sm:$0xff]
        %v893 = vld [vmem:[%s7 + $0x10] sm:$0xff]
        %v894 = vld [vmem:[%s7 + $0x18] sm:$0xff]
        %896 = vset.pattern.permute.xlu0 0
        %897 = vperm.xlu0 %896, %v891
        %v898 = vpop.permute.xlu0 %897
        %901 = vset.pattern.permute.xlu0 0
        %902 = vperm.xlu0 %901, %v892
        %v903 = vpop.permute.xlu0 %902
        %906 = vset.pattern.permute.xlu0 0
        %907 = vperm.xlu0 %906, %v893
        %v908 = vpop.permute.xlu0 %907
        %911 = vset.pattern.permute.xlu0 0
        %912 = vperm.xlu0 %911, %v894
        %v913 = vpop.permute.xlu0 %912
        %v915 = vmul.f32 %v563, %v898
        %v916 = vmul.f32 %v564, %v903
        %v917 = vmul.f32 %v565, %v908
        %v918 = vmul.f32 %v566, %v913
        %v919 = vadd.f32 %v915, %v916
        %v920 = vadd.f32 %v919, %v917
        %v921 = vadd.f32 %v920, %v918
        %v922 = vrot.slane %v921, 4
        %v923 = vadd.f32 %v921, %v922
        %v924 = vrot.slane %v923, 2
        %v925 = vadd.f32 %v923, %v924
        %v926 = vrot.slane %v925, 1
        %v927 = vadd.f32 %v925, %v926
        %v928 = vld [vmem:[%s8] sm:$0xff]
        %v929 = vld [vmem:[%s8 + $0x8] sm:$0xff]
        %v930 = vld [vmem:[%s8 + $0x10] sm:$0xff]
        %v931 = vld [vmem:[%s8 + $0x18] sm:$0xff]
        %933 = vset.pattern.permute.xlu0 0
        %934 = vperm.xlu0 %933, %v928
        %v935 = vpop.permute.xlu0 %934
        %938 = vset.pattern.permute.xlu0 0
        %939 = vperm.xlu0 %938, %v929
        %v940 = vpop.permute.xlu0 %939
        %943 = vset.pattern.permute.xlu0 0
        %944 = vperm.xlu0 %943, %v930
        %v945 = vpop.permute.xlu0 %944
        %948 = vset.pattern.permute.xlu0 0
        %949 = vperm.xlu0 %948, %v931
        %v950 = vpop.permute.xlu0 %949
        %v952 = vmul.f32 %v887, %v935
        %v953 = vmul.f32 %v888, %v940
        %v954 = vmul.f32 %v889, %v945
        %v955 = vmul.f32 %v890, %v950
        %v956 = vadd.f32 %v952, %v953
        %v957 = vadd.f32 %v956, %v954
        %v958 = vadd.f32 %v957, %v955
        %v959 = vrot.slane %v958, 4
        %v960 = vadd.f32 %v958, %v959
        %v961 = vrot.slane %v960, 2
        %v962 = vadd.f32 %v960, %v961
        %v963 = vrot.slane %v962, 1
        %v964 = vadd.f32 %v962, %v963
        %v965 = vadd.f32 %v927, %v964
        %966 = vst [vmem:[%s375] sm:$0x1] %v965
        %s967 = sand.u32 %s225, 1
        %s968 = scalar_lea.sflag [#allocation4], %s967
        %s969 = sand.u32 %s225, 1
        %s970 = scalar_lea.vmem [#allocation3], %s969
        // Predicated region
        $region95: #{tpu_custom_call.1} parent=89 // pred_check
          %p971 = pneg %p235
        $region96: #{tpu_custom_call.1} parent=89 // pred_check_branch
          %973 = sbr.rel (%p971) target = $region98
        $region97: #{tpu_custom_call.1} parent=89 // pred_region
          %s975 = ssub.s32 16, 16
          %976 = vsyncadd %s968, %s975
          %s977 = smul.addr %s23, 16
          %s978 = scalar_lea.hbm %s9, %s977
          %s980 = sshll.u32 %s970, 4
          %s981 = int_to_ptr.vmem [resolvable:$true] %s980
          %983 = dma.vmem_to_hbm [thread:$0]  %s981, 16, %s978, %s968
        $region98: #{tpu_custom_call.1} parent=89 // pred_fallthru
          _
      $region90: #{tpu_custom_call.1} parent=5 // pred_fallthru
        _
      %p984 = scmp.le.s32.totalorder 2, %s18
      // Predicated region
      $region99: #{tpu_custom_call.1} parent=5 // pred_check
        %p985 = pneg %p984
      $region100: #{tpu_custom_call.1} parent=5 // pred_check_branch
        %987 = sbr.rel (%p985) target = $region102
      $region101: #{tpu_custom_call.1} parent=5 // pred_region
        %s988 = ssub.s32 %s18, 2
        // Predicated region
        $region103: #{tpu_custom_call.1} parent=101 // pred_check
          %p989 = pneg %p241
        $region104: #{tpu_custom_call.1} parent=101 // pred_check_branch
          %991 = sbr.rel (%p989) target = $region106
        $region105: #{tpu_custom_call.1} parent=101 // pred_region
          %s992 = sand.u32 %s226, 1
          %s993 = scalar_lea.sflag [#allocation4], %s992
          %s994 = sand.u32 %s226, 1
          %s995 = scalar_lea.vmem [#allocation3], %s994
          %996 = dma.done %s993, 16
        $region106: #{tpu_custom_call.1} parent=101 // pred_fallthru
          _
      $region102: #{tpu_custom_call.1} parent=5 // pred_fallthru
        _
    $region6: #{tpu_custom_call.1} parent=1 // loop_footer
      %s22 = sadd.s32 1, %s18
    $region7: #{tpu_custom_call.1} parent=1 // loop_footer_branch
      %17 = sbr.rel target = $region3
    $region8: #{tpu_custom_call.1} parent=1 // loop_exit
      _
    %997 = vsyncpa [#allocation4], 1
    %s998 = scalar_lea.sflag [#allocation4], 1
    %999 = vsyncpa %s998, 1

</llo_original>
